<compile_context>
chip_gen: v7x
topology: tpu7x:2x2x1
jax: 0.10.0
libtpu: 0.0.40
codegen_flags: <defaults>
</compile_context>

<pallas_src>
import jax
import jax.numpy as jnp
from jax.experimental import pallas as pl
from jax.experimental.pallas import tpu as pltpu

MAX_LEN = 250

# ~4 MiB per x block: >=85% of HBM roofline on v5e/v6e/v7x, and the
# double-buffered footprint (~18 MiB) fits every generation's physical VMEM.
_TARGET_BLOCK_BYTES = 4 * 1024 * 1024


def _round_up(v: int, m: int) -> int:
    return ((v + m - 1) // m) * m


def make_pe_table(d_model: int, max_len: int = MAX_LEN,
                  dtype=jnp.float32) -> jnp.ndarray:
    """Deterministic sinusoidal table, identical to the PyTorch __init__.

    Built once at the target dtype (no per-call convert inside the kernel).
    Also handles odd d_model cleanly (the torch reference would error there).
    """
    pos = jnp.arange(max_len, dtype=jnp.float32)[:, None]              # (max_len, 1)
    div = jnp.exp(jnp.arange(0, d_model, 2, dtype=jnp.float32)
                  * (-jnp.log(10000.0) / d_model))                     # (ceil(D/2),)
    ang = pos * div                                                     # (max_len, ceil(D/2))
    pe = jnp.zeros((max_len, d_model), dtype=jnp.float32)
    pe = pe.at[:, 0::2].set(jnp.sin(ang))
    pe = pe.at[:, 1::2].set(jnp.cos(ang)[:, : d_model // 2])
    return pe[None, :, :].astype(dtype)                                 # (1, max_len, D)


def _posenc_kernel(x_ref, pe_ref, o_ref):
    # x_ref / o_ref: (b_tile, chunk); pe_ref: (1, chunk).
    # The (1, chunk) operand broadcasts over sublanes; verified to lower
    # without materializing a (b_tile, chunk) temp on current Mosaic.
    o_ref[...] = x_ref[...] + pe_ref[...]


def _pos_enc_impl(x: jnp.ndarray, pe_table: jnp.ndarray) -> jnp.ndarray:
    """x: (B, S, D); pe_table: (1, max_len, D). Returns x + pe[:, :S, :]."""
    B, S, D = x.shape
    _, max_len, d_model = pe_table.shape
    if D != d_model:
        raise ValueError(f"d_model mismatch: x has {D}, pe table has {d_model}")
    if S > max_len:
        raise ValueError(f"sequence length {S} exceeds max_len {max_len}")

    total = S * D                                    # flattened (seq, feature) extent
    itemsize = jnp.dtype(x.dtype).itemsize
    # Sublane packing: 8 rows (f32), 16 (bf16/f16), 32 (int8/fp8) per vreg.
    sublane = max(8, 32 // itemsize)

    # Lane-dense flat views. x[b, s, d] <-> x_flat[b, s*D + d]; the same flat
    # offset indexes pe_flat (row-major over (max_len, D)), so no wrapper-side
    # pe[:, :S, :] slice/copy is needed.
    x_flat = x.reshape(B, total)
    if pe_table.dtype != x.dtype:
        # Prefer building the table at x.dtype (make_pe_table(dtype=...)) so
        # this trace-time branch is dead; kept only as a safety net.
        pe_table = pe_table.astype(x.dtype)
    pe_flat = pe_table.reshape(1, max_len * D)

    # ---- lane chunk: balanced, lane-aligned, byte-capped ----
    # Cap so a `sublane`-row block is ~TARGET bytes (sublane*itemsize == 32).
    max_chunk = max(128, _TARGET_BLOCK_BYTES // (sublane * itemsize))
    n_chunks = pl.cdiv(total, max_chunk)
    chunk = _round_up(pl.cdiv(total, n_chunks), 128)
    if chunk >= total:
        chunk = total                   # full-extent last dim (legal even if %128 != 0)
        n_chunks = 1
    else:
        n_chunks = pl.cdiv(total, chunk)

    # ---- batch tile: grow toward the byte target, sublane-aligned ----
    b_target = max(sublane, _TARGET_BLOCK_BYTES // (chunk * itemsize))
    if B <= b_target:
        b_tile = B                                  # full batch dim (always legal)
    else:
        b_tile = (b_target // sublane) * sublane    # aligned partial tile
    n_btiles = pl.cdiv(B, b_tile)

    # ---- megacore (v7x): guarantee >= 2 grid steps so both TCs get work ----
    if n_chunks * n_btiles < 2:
        if B >= 2 * sublane:
            # Split batch (keeps pe-invariant inner axis, pe stays resident).
            b_tile = _round_up(B // 2, sublane)
            n_btiles = pl.cdiv(B, b_tile)
        elif total >= 256:
            # Split the lane axis instead (pe re-read once per chunk: cheap).
            chunk = _round_up(pl.cdiv(total, 2), 128)
            n_chunks = pl.cdiv(total, chunk)
        # else: problem too small to split cleanly; single step is fine.

    # Batch is the innermost grid axis -> pe block index is constant across
    # consecutive steps, so Pallas skips re-DMAing pe from HBM.
    grid = (n_chunks, n_btiles)

    # Double-buffered footprint: 2*(x block) + 2*(out block) + 2*(pe block),
    # plus margin for internal scratch. Set explicitly so the v5e 16 MiB
    # scoped default never silently caps the 4 MiB-block choice; stays far
    # below physical VMEM on every generation (v7x: 64 MiB per TC).
    block_bytes = b_tile * chunk * itemsize
    vmem_need = 4 * block_bytes + 2 * (chunk * itemsize) + (2 << 20)
    vmem_limit = int(min(max(vmem_need, 20 << 20), 48 << 20))

    cost = pl.CostEstimate(
        flops=B * total,
        transcendentals=0,
        bytes_accessed=(2 * B * total + total) * itemsize,
    )

    out_flat = pl.pallas_call(
        _posenc_kernel,
        out_shape=jax.ShapeDtypeStruct((B, total), x.dtype),
        grid_spec=pltpu.PrefetchScalarGridSpec(
            num_scalar_prefetch=0,
            grid=grid,
            in_specs=[
                pl.BlockSpec((b_tile, chunk), lambda c, b: (b, c)),  # x tile
                pl.BlockSpec((1, chunk), lambda c, b: (0, c)),       # pe tile (batch-invariant)
            ],
            out_specs=pl.BlockSpec((b_tile, chunk), lambda c, b: (b, c)),
        ),
        compiler_params=pltpu.CompilerParams(
            dimension_semantics=("parallel", "parallel"),
            vmem_limit_bytes=vmem_limit,
        ),
        input_output_aliases={0: 0},   # write the result back into x's buffer
        cost_estimate=cost,
    )(x_flat, pe_flat)

    return out_flat.reshape(B, S, D)


# Donate x at the jit boundary so the in-place alias holds end-to-end
# (x is consumed by the call; don't reuse it afterwards).
pos_enc = jax.jit(_pos_enc_impl, donate_argnums=(0,))


if __name__ == "__main__":
    B, S, D = 2, 8, 32
    key = jax.random.PRNGKey(0)
    x = jax.random.normal(key, (B, S, D), dtype=jnp.float32)

    # Build the pe table once at x's dtype (mirrors torch __init__; no per-call cast).
    pe_full = make_pe_table(D, MAX_LEN, dtype=x.dtype)

    # Reference (plain JAX) computed BEFORE the kernel call, since x is donated.
    ref = x + pe_full[:, :S, :]
    ref = jax.block_until_ready(ref)

    out = pos_enc(x, pe_full)
    out = jax.block_until_ready(out)

    assert out.shape == (B, S, D)
    assert out.dtype == ref.dtype
    assert jnp.allclose(out, ref, atol=1e-6), "mismatch vs reference"

    print("KERNEL_OK")
</pallas_src>

<mosaic_0001>
module attributes {stable_mosaic.version = 11 : i64} {
  func.func @_posenc_kernel(%arg0: i32, %arg1: i32, %arg2: memref<2x128xf32, #tpu.memory_space<vmem>>, %arg3: memref<1x128xf32, #tpu.memory_space<vmem>>, %arg4: memref<2x128xf32, #tpu.memory_space<vmem>>) attributes {dimension_semantics = [#tpu.dimension_semantics<parallel>, #tpu.dimension_semantics<parallel>], iteration_bounds = array<i64: 2, 1>, scalar_prefetch = 0 : i64, scratch_operands = 0 : i64, tpu.core_type = #tpu.core_type<tc>, window_params = [{transform_indices = @transform_0, window_bounds = array<i64: 2, 128>}, {transform_indices = @transform_1, window_bounds = array<i64: 1, 128>}, {transform_indices = @transform_2, window_bounds = array<i64: 2, 128>}]} {
    %c0 = arith.constant 0 : index
    %c0_0 = arith.constant 0 : index
    %0 = vector.load %arg2[%c0, %c0_0] : memref<2x128xf32, #tpu.memory_space<vmem>>, vector<2x128xf32>
    %c0_1 = arith.constant 0 : index
    %c0_2 = arith.constant 0 : index
    %1 = vector.load %arg3[%c0_1, %c0_2] : memref<1x128xf32, #tpu.memory_space<vmem>>, vector<1x128xf32>
    %2 = vector.broadcast %1 : vector<1x128xf32> to vector<2x128xf32>
    %3 = arith.addf %0, %2 : vector<2x128xf32>
    %c0_3 = arith.constant 0 : index
    %c0_4 = arith.constant 0 : index
    %4 = vector.load %arg4[%c0_3, %c0_4] : memref<2x128xf32, #tpu.memory_space<vmem>>, vector<2x128xf32>
    tpu.vector_store %arg4[%c0_3, %c0_4], %3 {strides = array<i32>} : memref<2x128xf32, #tpu.memory_space<vmem>>, vector<2x128xf32>,
    return
  }
  func.func @transform_0(%arg0: i32, %arg1: i32) -> (i32, i32) {
    %c0_i32 = arith.constant 0 : i32
    return %arg1, %arg0 : i32, i32
  }
  func.func @transform_1(%arg0: i32, %arg1: i32) -> (i32, i32) {
    %c0_i32 = arith.constant 0 : i32
    %c0_i32_0 = arith.constant 0 : i32
    return %c0_i32, %arg0 : i32, i32
  }
  func.func @transform_2(%arg0: i32, %arg1: i32) -> (i32, i32) {
    %c0_i32 = arith.constant 0 : i32
    return %arg1, %arg0 : i32, i32
  }
}

</mosaic_0001>

<llo_original>
// kernel: _pos_enc_impl.1
$region0: #{_pos_enc_impl.1}
  #allocation0 [shape = 'u32[]', space=smem, size = 0x4, offset = 0x4, fixed_abs, tag = 'smem constant byte address 0x4 - core index']
  #allocation1 [shape = 'u32[144,128]{1,0:T(1,128)}', space=vmem, size = 0x12000, scoped, tag = 'internal scratch']
  %s0 = inlined_call_operand.vmem [shape: f32[2,256], index: 0, kind: input, shape index: {}, may-alias: {0,2}]
  %s1 = inlined_call_operand.vmem [shape: f32[1,8000], index: 1, kind: input, shape index: {}]
  %s2 = inlined_call_operand.vmem [shape: f32[2,256], index: 2, kind: output, shape index: {}, may-alias: {0,2}]
  %s3 = sld [smem:[#allocation0]]
  $region41: #{_pos_enc_impl.1} parent=0
    _
  %s5 = ssub.s32 1, %s3
  %s6 = scalar_select 0, %s5, %s3
  loop: start=0, step=1, limit=4
  $region2: #{_pos_enc_impl.1} parent=0 // loop_pre_header
    _
  $region3: #{_pos_enc_impl.1} parent=0 // loop_header
    %s8 = sphi 0, %s12
    %p9 = scmp.ge.s32.totalorder %s8, 4
    %s15 = sphi 0, %s27
    %s16 = sphi 0, %s23
    %s17 = sphi 0, %s15
    %s18 = sphi 0, %s16
    %s19 = sphi 0, %s17
    %s20 = sphi 0, %s18
    %s32 = sphi 0, %s34
    %s35 = sphi 0, %s32
    %s36 = sphi 0, %s35
    %s52 = sphi 0, %s36
    %s58 = sphi 0, %s60
    %s61 = sphi 0, %s58
    %s62 = sphi 0, %s61
    %s78 = sphi 0, %s62
    %s86 = sphi 0, %s88
    %s89 = sphi 0, %s86
    %s90 = sphi 0, %s89
    %s106 = sphi 0, %s90
  $region4: #{_pos_enc_impl.1} parent=0 // loop_header_branch
    %11 = sbr.rel (%p9) target = $region8
  $region5: #{_pos_enc_impl.1} parent=0 // loop_body
    %s13 = ssub.s32 %s8, 1
    %s14 = ssub.s32 %s8, 2
    %s21 = sadd.s32 1, %s16
    %p22 = scmp.ge.s32.totalorder %s21, 1
    %s23 = scalar_select %p22, 0, %s21
    %s24 = sadd.s32 1, %s15
    %s25 = scalar_select %p22, %s24, %s15
    %p26 = scmp.ge.s32.totalorder %s25, 2
    %s27 = scalar_select %p26, 0, %s25
    %s28 = ssub.s32 %s16, %s23
    %s29 = ssub.s32 %s15, %s27
    %s30 = sor.u32 %s28, %s29
    %p31 = scmp.eq.s32.totalorder %s30, 0
    %s33 = sadd.s32 %s32, 1
    %s34 = scalar_select %p31, %s32, %s33
    %p37 = pneg %p31
    %p38 = scmp.eq.s32.totalorder %s8, 1
    %p39 = por %p37, %p38
    %p40 = scmp.ne.s32.totalorder %s32, %s35
    %p41 = scmp.eq.s32.totalorder %s8, 0
    %p42 = por %p40, %p41
    %p43 = scmp.ne.s32.totalorder %s32, %s35
    %p44 = scmp.eq.s32.totalorder %s13, 1
    %p45 = por %p43, %p44
    %p46 = scmp.ne.s32.totalorder %s35, %s36
    %p47 = scmp.eq.s32.totalorder %s13, 0
    %p48 = por %p46, %p47
    %p49 = scmp.ne.s32.totalorder %s35, %s36
    %p50 = scmp.eq.s32.totalorder %s14, 1
    %p51 = por %p49, %p50
    %p53 = scmp.ne.s32.totalorder %s36, %s52
    %p54 = scmp.eq.s32.totalorder %s14, 0
    %p55 = por %p53, %p54
    %s56 = ssub.s32 %s15, %s27
    %p57 = scmp.eq.s32.totalorder %s56, 0
    %s59 = sadd.s32 %s58, 1
    %s60 = scalar_select %p57, %s58, %s59
    %p63 = pneg %p57
    %p64 = scmp.eq.s32.totalorder %s8, 1
    %p65 = por %p63, %p64
    %p66 = scmp.ne.s32.totalorder %s58, %s61
    %p67 = scmp.eq.s32.totalorder %s8, 0
    %p68 = por %p66, %p67
    %p69 = scmp.ne.s32.totalorder %s58, %s61
    %p70 = scmp.eq.s32.totalorder %s13, 1
    %p71 = por %p69, %p70
    %p72 = scmp.ne.s32.totalorder %s61, %s62
    %p73 = scmp.eq.s32.totalorder %s13, 0
    %p74 = por %p72, %p73
    %p75 = scmp.ne.s32.totalorder %s61, %s62
    %p76 = scmp.eq.s32.totalorder %s14, 1
    %p77 = por %p75, %p76
    %p79 = scmp.ne.s32.totalorder %s62, %s78
    %p80 = scmp.eq.s32.totalorder %s14, 0
    %p81 = por %p79, %p80
    %s82 = ssub.s32 %s16, %s23
    %s83 = ssub.s32 %s15, %s27
    %s84 = sor.u32 %s82, %s83
    %p85 = scmp.eq.s32.totalorder %s84, 0
    %s87 = sadd.s32 %s86, 1
    %s88 = scalar_select %p85, %s86, %s87
    %p91 = pneg %p85
    %p92 = scmp.eq.s32.totalorder %s8, 1
    %p93 = por %p91, %p92
    %p94 = scmp.ne.s32.totalorder %s86, %s89
    %p95 = scmp.eq.s32.totalorder %s8, 0
    %p96 = por %p94, %p95
    %p97 = scmp.ne.s32.totalorder %s86, %s89
    %p98 = scmp.eq.s32.totalorder %s13, 1
    %p99 = por %p97, %p98
    %p100 = scmp.ne.s32.totalorder %s89, %s90
    %p101 = scmp.eq.s32.totalorder %s13, 0
    %p102 = por %p100, %p101
    %p103 = scmp.ne.s32.totalorder %s89, %s90
    %p104 = scmp.eq.s32.totalorder %s14, 1
    %p105 = por %p103, %p104
    %p107 = scmp.ne.s32.totalorder %s90, %s106
    %p108 = scmp.eq.s32.totalorder %s14, 0
    %p109 = por %p107, %p108
    %p110 = scmp.le.s32.totalorder 1, %s8
    %p111 = scmp.lt.s32.totalorder %s8, 3
    %p112 = pnand %p110, %p111
    %p113 = pneg %p112
    // Predicated region
    $region9: #{_pos_enc_impl.1} parent=5 // pred_check
      _
    $region10: #{_pos_enc_impl.1} parent=5 // pred_check_branch
      %115 = sbr.rel (%p112) target = $region12
    $region11: #{_pos_enc_impl.1} parent=5 // pred_region
      %s116 = ssub.s32 %s8, 1
    $region12: #{_pos_enc_impl.1} parent=5 // pred_fallthru
      _
    %p117 = scmp.lt.s32.totalorder %s8, 2
    // Predicated region
    $region13: #{_pos_enc_impl.1} parent=5 // pred_check
      %p118 = pneg %p117
    $region14: #{_pos_enc_impl.1} parent=5 // pred_check_branch
      %120 = sbr.rel (%p118) target = $region16
    $region15: #{_pos_enc_impl.1} parent=5 // pred_region
      // Predicated region
      $region17: #{_pos_enc_impl.1} parent=15 // pred_check
        %p121 = pneg %p42
      $region18: #{_pos_enc_impl.1} parent=15 // pred_check_branch
        %123 = sbr.rel (%p121) target = $region20
      $region19: #{_pos_enc_impl.1} parent=15 // pred_region
        %p124 = scmp.lt.s32.totalorder %s16, 0
        %s125 = scalar_select %p124, %s16, 0
        %p126 = scmp.lt.s32.totalorder %s15, 1
        %s127 = scalar_select %p126, %s15, 1
        %s128 = smul.addr %s125, 2
        %s129 = sadd.s32 %s127, %s128
        %s130 = smul.addr %s129, 2
        %s131 = scalar_lea.vmem %s0, %s130
      $region20: #{_pos_enc_impl.1} parent=15 // pred_fallthru
        _
      // Predicated region
      $region21: #{_pos_enc_impl.1} parent=15 // pred_check
        %p132 = pneg %p68
      $region22: #{_pos_enc_impl.1} parent=15 // pred_check_branch
        %134 = sbr.rel (%p132) target = $region24
      $region23: #{_pos_enc_impl.1} parent=15 // pred_region
        %p135 = scmp.lt.s32.totalorder %s15, 62
        %s136 = scalar_select %p135, %s15, 62
        %s137 = scalar_lea.vmem %s1, %s136
      $region24: #{_pos_enc_impl.1} parent=15 // pred_fallthru
        _
    $region16: #{_pos_enc_impl.1} parent=5 // pred_fallthru
      _
    %p138 = scmp.le.s32.totalorder 1, %s8
    %p139 = scmp.lt.s32.totalorder %s8, 3
    %p140 = pnand %p138, %p139
    %p141 = pneg %p140
    // Predicated region
    $region25: #{_pos_enc_impl.1} parent=5 // pred_check
      _
    $region26: #{_pos_enc_impl.1} parent=5 // pred_check_branch
      %143 = sbr.rel (%p140) target = $region28
    $region27: #{_pos_enc_impl.1} parent=5 // pred_region
      %s144 = ssub.s32 %s8, 1
      %p145 = scmp.lt.s32.totalorder %s18, 0
      %s146 = scalar_select %p145, %s18, 0
      %p147 = scmp.lt.s32.totalorder %s17, 1
      %s148 = scalar_select %p147, %s17, 1
      %s149 = smul.addr %s146, 2
      %s150 = sadd.s32 %s148, %s149
      %s151 = smul.addr %s150, 2
      %s152 = scalar_lea.vmem %s0, %s151
      %p153 = pneg %p48
      %p154 = pneg %p45
      %p155 = scmp.lt.s32.totalorder %s17, 62
      %s156 = scalar_select %p155, %s17, 62
      %s157 = scalar_lea.vmem %s1, %s156
      %p158 = pneg %p74
      %p159 = pneg %p71
      %p160 = pneg %p102
      %p161 = pneg %p99
      %p162 = scmp.lt.s32.totalorder %s18, 0
      %s163 = scalar_select %p162, %s18, 0
      %p164 = scmp.lt.s32.totalorder %s17, 1
      %s165 = scalar_select %p164, %s17, 1
      %s166 = smul.addr %s163, 2
      %s167 = sadd.s32 %s165, %s166
      %s168 = smul.addr %s167, 2
      %s169 = scalar_lea.vmem %s2, %s168
      %p170 = scmp.lt.s32.totalorder %s18, 0
      %s171 = scalar_select %p170, %s18, 0
      %p172 = scmp.lt.s32.totalorder %s17, 1
      %s173 = scalar_select %p172, %s17, 1
      %s174 = smul.addr %s171, 2
      %s175 = sadd.s32 %s173, %s174
      %s176 = smul.addr %s175, 2
      %s177 = scalar_lea.vmem %s0, %s176
      %p178 = scmp.lt.s32.totalorder %s17, 62
      %s179 = scalar_select %p178, %s17, 62
      %s180 = scalar_lea.vmem %s1, %s179
      %p181 = scmp.lt.s32.totalorder %s18, 0
      %s182 = scalar_select %p181, %s18, 0
      %p183 = scmp.lt.s32.totalorder %s17, 1
      %s184 = scalar_select %p183, %s17, 1
      %s185 = smul.addr %s182, 2
      %s186 = sadd.s32 %s184, %s185
      %s187 = smul.addr %s186, 2
      %s188 = scalar_lea.vmem %s2, %s187
      %v189 = vld [vmem:[%s177] sm:$0x3]
      %v190 = vld [vmem:[%s180] sm:$0x1]
      %v192 = vlaneseq
      %v193 = vshrl.u32 %v192, 7
      %v194 = vsub.s32 0, %v193
      %v195 = vrot.slane %v190, %v194
      %v197 = vadd.f32 %v189, %v195
      %198 = vst [vmem:[%s188] sm:$0x3] %v197
      %p199 = scmp.lt.s32.totalorder %s18, 0
      %s200 = scalar_select %p199, %s18, 0
      %p201 = scmp.lt.s32.totalorder %s17, 1
      %s202 = scalar_select %p201, %s17, 1
      %s203 = smul.addr %s200, 2
      %s204 = sadd.s32 %s202, %s203
      %s205 = smul.addr %s204, 2
      %s206 = scalar_lea.vmem %s2, %s205
      // Predicated region
      $region29: #{_pos_enc_impl.1} parent=27 // pred_check
        %p207 = pneg %p99
      $region30: #{_pos_enc_impl.1} parent=27 // pred_check_branch
        %209 = sbr.rel (%p207) target = $region32
      $region31: #{_pos_enc_impl.1} parent=27 // pred_region
        _
      $region32: #{_pos_enc_impl.1} parent=27 // pred_fallthru
        _
    $region28: #{_pos_enc_impl.1} parent=5 // pred_fallthru
      _
    %p210 = scmp.le.s32.totalorder 2, %s8
    // Predicated region
    $region33: #{_pos_enc_impl.1} parent=5 // pred_check
      %p211 = pneg %p210
    $region34: #{_pos_enc_impl.1} parent=5 // pred_check_branch
      %213 = sbr.rel (%p211) target = $region36
    $region35: #{_pos_enc_impl.1} parent=5 // pred_region
      %s214 = ssub.s32 %s8, 2
      // Predicated region
      $region37: #{_pos_enc_impl.1} parent=35 // pred_check
        %p215 = pneg %p105
      $region38: #{_pos_enc_impl.1} parent=35 // pred_check_branch
        %217 = sbr.rel (%p215) target = $region40
      $region39: #{_pos_enc_impl.1} parent=35 // pred_region
        %p218 = scmp.lt.s32.totalorder %s20, 0
        %s219 = scalar_select %p218, %s20, 0
        %p220 = scmp.lt.s32.totalorder %s19, 1
        %s221 = scalar_select %p220, %s19, 1
        %s222 = smul.addr %s219, 2
        %s223 = sadd.s32 %s221, %s222
        %s224 = smul.addr %s223, 2
        %s225 = scalar_lea.vmem %s2, %s224
      $region40: #{_pos_enc_impl.1} parent=35 // pred_fallthru
        _
    $region36: #{_pos_enc_impl.1} parent=5 // pred_fallthru
      _
  $region6: #{_pos_enc_impl.1} parent=0 // loop_footer
    %s12 = sadd.s32 1, %s8
  $region7: #{_pos_enc_impl.1} parent=0 // loop_footer_branch
    %7 = sbr.rel target = $region3
  $region8: #{_pos_enc_impl.1} parent=0 // loop_exit
    _

</llo_original>
